<compile_context>
chip_gen: v7x
topology: tpu7x:2x2x1
jax: 0.10.0
libtpu: 0.0.40
codegen_flags: <defaults>
</compile_context>

<pallas_src>
import math
import jax
import jax.numpy as jnp
from jax import lax
from jax.experimental import pallas as pl
from jax.experimental.pallas import tpu as pltpu

N_GROUP = 4  # C4 rotation group (regular repr dim)


def _round_up(x, m):
    return (x + m - 1) // m * m


def _round_down(x, m):
    return (x // m) * m


# -----------------------------------------------------------------------------
# Equivariant parameter expansion (glue, plain JAX)
# -----------------------------------------------------------------------------
def expand_regular_weight(w_free):
    """w_free: (O, I, 4) free params -> dense (I*4, O*4) matrix for x @ W."""
    O, I, N = w_free.shape
    go = jnp.arange(N)[:, None]          # output group element
    gi = jnp.arange(N)[None, :]          # input group element
    idx = (gi - go) % N                  # (N, N)
    # W[o, go, i, gi] = w_free[o, i, (gi - go) % N]
    w_full = w_free[:, :, idx]           # (O, I, N, N) with dims (o, i, go, gi)
    w_full = jnp.transpose(w_full, (0, 2, 1, 3)).reshape(O * N, I * N)
    return w_full.T                      # (I*4, O*4)


def expand_regular_bias(b_free):
    """b_free: (O,) -> (O*4,) invariant bias (same value on all 4 group chans)."""
    return jnp.repeat(b_free, N_GROUP)


# -----------------------------------------------------------------------------
# Pallas kernel: fused per-pixel 2-layer MLP with exact (erf) GELU.
# Layout inside the kernel: channels on sublanes, pixels on lanes.
# Block shapes: x (bb, Cin, tp), out (bb, Cout, tp); bb is statically unrolled.
# -----------------------------------------------------------------------------
def gmlp_kernel(x_ref, w1t_ref, b1_ref, w2t_ref, b2_ref, o_ref):
    w1t = w1t_ref[...]                   # (Cmid, Cin)  -- VMEM resident
    b1 = b1_ref[...]                     # (Cmid, 1)
    w2t = w2t_ref[...]                   # (Cout, Cmid)
    b2 = b2_ref[...]                     # (Cout, 1)
    bb = x_ref.shape[0]
    for b in range(bb):                  # small, statically unrolled
        x = x_ref[b]                                                      # (Cin, tp)
        h = jnp.dot(w1t, x, preferred_element_type=jnp.float32)           # (Cmid, tp)
        h = h + b1                                                        # lane bcast
        # exact GELU (matches torch.nn.functional.gelu default, erf-based)
        h = 0.5 * h * (1.0 + lax.erf(h * 0.7071067811865476))
        y = jnp.dot(w2t, h, preferred_element_type=jnp.float32)           # (Cout, tp)
        y = y + b2
        o_ref[b] = y.astype(o_ref.dtype)


def gmlp2d_forward(x_nchw, w1, b1, w2, b2, *,
                   vmem_budget_bytes=8 << 20, max_batch_block=8):
    """x_nchw: (B, Cin, H, W) float32;  w1: (Cin, Cmid);  w2: (Cmid, Cout)."""
    B, Cin, H, W = x_nchw.shape
    Cmid = w1.shape[1]
    Cout = w2.shape[1]
    HW = H * W

    # Native NCHW: (B, Cin, H, W) -> (B, Cin, HW).  Contiguous reshape.
    x3 = x_nchw.reshape(B, Cin, HW)

    # --- tile sizing from a VMEM budget (f32) ---------------------------------
    # per-pixel footprint: double-buffered input + output tiles + intermediate h
    bytes_per_px = 4 * (2 * Cin + 2 * Cout + Cmid)
    max_px = max(128, vmem_budget_bytes // bytes_per_px)     # pixels per step
    tp = min(_round_up(HW, 128), max(128, _round_down(max_px, 128)))
    HW_pad = _round_up(HW, tp)
    n_p = HW_pad // tp
    if HW_pad != HW:
        x3 = jnp.pad(x3, ((0, 0), (0, 0), (0, HW_pad - HW)))

    # Pack several images per step when a single image fits in one tile.
    bb = 1
    if n_p == 1 and B > 1:
        max_bb = min(B, max_batch_block, max(1, max_px // tp))
        for d in range(max_bb, 0, -1):
            if B % d == 0:
                bb = d
                break

    # Weights transposed so the kernel computes W^T @ x; biases as column vecs
    # that broadcast over the lane (pixel) axis.  A few KiB total.
    w1t = jnp.transpose(w1)              # (Cmid, Cin)
    w2t = jnp.transpose(w2)              # (Cout, Cmid)
    b1c = b1.reshape(Cmid, 1)
    b2c = b2.reshape(Cout, 1)

    grid = (B // bb, n_p)

    out3 = pl.pallas_call(
        gmlp_kernel,
        out_shape=jax.ShapeDtypeStruct((B, Cout, HW_pad), x_nchw.dtype),
        grid_spec=pltpu.PrefetchScalarGridSpec(
            num_scalar_prefetch=0,
            grid=grid,
            in_specs=[
                pl.BlockSpec((bb, Cin, tp), lambda b, p: (b, 0, p)),
                # Constant index_maps: these blocks are revisited, so Pallas
                # DMAs them once and keeps them VMEM-resident.
                pl.BlockSpec((Cmid, Cin), lambda b, p: (0, 0)),
                pl.BlockSpec((Cmid, 1), lambda b, p: (0, 0)),
                pl.BlockSpec((Cout, Cmid), lambda b, p: (0, 0)),
                pl.BlockSpec((Cout, 1), lambda b, p: (0, 0)),
            ],
            out_specs=pl.BlockSpec((bb, Cout, tp), lambda b, p: (b, 0, p)),
        ),
        compiler_params=pltpu.CompilerParams(
            dimension_semantics=("parallel", "parallel")),
    )(x3, w1t, b1c, w2t, b2c)

    if HW_pad != HW:
        out3 = out3[:, :, :HW]
    return out3.reshape(B, Cout, H, W)


# -----------------------------------------------------------------------------
# Pure-JAX reference (for a sanity check)
# -----------------------------------------------------------------------------
def gmlp2d_ref(x_nchw, w1, b1, w2, b2):
    B, Cin, H, W = x_nchw.shape
    x2d = jnp.transpose(x_nchw, (0, 2, 3, 1)).reshape(B * H * W, Cin)
    h = jax.nn.gelu(x2d @ w1 + b1, approximate=False)
    y = h @ w2 + b2
    out = y.reshape(B, H, W, w2.shape[1])
    return jnp.transpose(out, (0, 3, 1, 2))


if __name__ == "__main__":
    # Module config: GMLP2d(in_channels=4, out_channels=4, mid_channels=8)
    in_channels, mid_channels, out_channels = 4, 8, 4
    Cin = in_channels * N_GROUP    # 16
    Cmid = mid_channels * N_GROUP  # 32
    Cout = out_channels * N_GROUP  # 16
    B, H, W = 2, 16, 16

    key = jax.random.PRNGKey(0)
    k1, k2, k3, k4, kx = jax.random.split(key, 5)

    # Deterministic synthetic equivariant parameters (free params then expand).
    w1_free = jax.random.normal(k1, (mid_channels, in_channels, N_GROUP),
                                jnp.float32) * (1.0 / math.sqrt(Cin))
    b1_free = jax.random.normal(k2, (mid_channels,), jnp.float32) * 0.01
    w2_free = jax.random.normal(k3, (out_channels, mid_channels, N_GROUP),
                                jnp.float32) * (1.0 / math.sqrt(Cmid))
    b2_free = jax.random.normal(k4, (out_channels,), jnp.float32) * 0.01

    w1 = expand_regular_weight(w1_free)   # (Cin, Cmid)
    b1 = expand_regular_bias(b1_free)     # (Cmid,)
    w2 = expand_regular_weight(w2_free)   # (Cmid, Cout)
    b2 = expand_regular_bias(b2_free)     # (Cout,)

    x = jax.random.normal(kx, (B, Cin, H, W), jnp.float32)  # NCHW, like PyTorch

    out = gmlp2d_forward(x, w1, b1, w2, b2)
    out = jax.block_until_ready(out)

    ref = gmlp2d_ref(x, w1, b1, w2, b2)
    assert out.shape == (B, Cout, H, W)
    assert jnp.allclose(out, ref, atol=1e-4, rtol=1e-4)

    print("KERNEL_OK")
</pallas_src>

<mosaic_0001>
module attributes {stable_mosaic.version = 11 : i64} {
  func.func @gmlp_kernel(%arg0: i32, %arg1: i32, %arg2: memref<2x16x256xf32, #tpu.memory_space<vmem>>, %arg3: memref<32x16xf32, #tpu.memory_space<vmem>>, %arg4: memref<32x1xf32, #tpu.memory_space<vmem>>, %arg5: memref<16x32xf32, #tpu.memory_space<vmem>>, %arg6: memref<16x1xf32, #tpu.memory_space<vmem>>, %arg7: memref<2x16x256xf32, #tpu.memory_space<vmem>>) attributes {dimension_semantics = [#tpu.dimension_semantics<parallel>, #tpu.dimension_semantics<parallel>], iteration_bounds = array<i64: 1, 1>, scalar_prefetch = 0 : i64, scratch_operands = 0 : i64, tpu.core_type = #tpu.core_type<tc>, window_params = [{transform_indices = @transform_0, window_bounds = array<i64: 2, 16, 256>}, {pipeline_mode = #tpu.pipeline_mode<synchronous>, transform_indices = @transform_1, window_bounds = array<i64: 32, 16>}, {pipeline_mode = #tpu.pipeline_mode<synchronous>, transform_indices = @transform_2, window_bounds = array<i64: 32, 1>}, {pipeline_mode = #tpu.pipeline_mode<synchronous>, transform_indices = @transform_3, window_bounds = array<i64: 16, 32>}, {pipeline_mode = #tpu.pipeline_mode<synchronous>, transform_indices = @transform_4, window_bounds = array<i64: 16, 1>}, {transform_indices = @transform_5, window_bounds = array<i64: 2, 16, 256>}]} {
    %c0 = arith.constant 0 : index
    %c0_0 = arith.constant 0 : index
    %0 = vector.load %arg3[%c0, %c0_0] : memref<32x16xf32, #tpu.memory_space<vmem>>, vector<32x16xf32>
    %c0_1 = arith.constant 0 : index
    %c0_2 = arith.constant 0 : index
    %1 = vector.load %arg4[%c0_1, %c0_2] : memref<32x1xf32, #tpu.memory_space<vmem>>, vector<32x1xf32>
    %c0_3 = arith.constant 0 : index
    %c0_4 = arith.constant 0 : index
    %2 = vector.load %arg5[%c0_3, %c0_4] : memref<16x32xf32, #tpu.memory_space<vmem>>, vector<16x32xf32>
    %c0_5 = arith.constant 0 : index
    %c0_6 = arith.constant 0 : index
    %3 = vector.load %arg6[%c0_5, %c0_6] : memref<16x1xf32, #tpu.memory_space<vmem>>, vector<16x1xf32>
    %c0_7 = arith.constant 0 : index
    %c0_8 = arith.constant 0 : index
    %c0_9 = arith.constant 0 : index
    %4 = vector.load %arg2[%c0_7, %c0_8, %c0_9] : memref<2x16x256xf32, #tpu.memory_space<vmem>>, vector<1x16x256xf32>
    %5 = vector.shape_cast %4 : vector<1x16x256xf32> to vector<16x256xf32>
    %cst = arith.constant dense<0.000000e+00> : vector<32x256xf32>
    %6 = tpu.matmul %0, %5, %cst {dimension_numbers = #tpu.dot_dimension_numbers<[1], [0], [0], [1], [0, 0, 1, 1], [], []>} : vector<32x16xf32>, vector<16x256xf32>, vector<32x256xf32> -> vector<32x256xf32>
    %7 = vector.broadcast %1 : vector<32x1xf32> to vector<32x256xf32>
    %8 = arith.addf %6, %7 : vector<32x256xf32>
    %cst_10 = arith.constant 5.000000e-01 : f32
    %9 = vector.broadcast %cst_10 : f32 to vector<32x256xf32>
    %10 = arith.mulf %9, %8 : vector<32x256xf32>
    %cst_11 = arith.constant 0.707106769 : f32
    %11 = vector.broadcast %cst_11 : f32 to vector<32x256xf32>
    %12 = arith.mulf %8, %11 : vector<32x256xf32>
    %13 = math.erf %12 : vector<32x256xf32>
    %cst_12 = arith.constant 1.000000e+00 : f32
    %14 = vector.broadcast %cst_12 : f32 to vector<32x256xf32>
    %15 = arith.addf %14, %13 : vector<32x256xf32>
    %16 = arith.mulf %10, %15 : vector<32x256xf32>
    %cst_13 = arith.constant dense<0.000000e+00> : vector<16x256xf32>
    %17 = tpu.matmul %2, %16, %cst_13 {dimension_numbers = #tpu.dot_dimension_numbers<[1], [0], [0], [1], [0, 0, 1, 1], [], []>} : vector<16x32xf32>, vector<32x256xf32>, vector<16x256xf32> -> vector<16x256xf32>
    %18 = vector.broadcast %3 : vector<16x1xf32> to vector<16x256xf32>
    %19 = arith.addf %17, %18 : vector<16x256xf32>
    %c0_14 = arith.constant 0 : index
    %c0_15 = arith.constant 0 : index
    %c0_16 = arith.constant 0 : index
    %20 = vector.load %arg7[%c0_14, %c0_15, %c0_16] : memref<2x16x256xf32, #tpu.memory_space<vmem>>, vector<1x16x256xf32>
    %21 = vector.shape_cast %20 : vector<1x16x256xf32> to vector<16x256xf32>
    %22 = vector.shape_cast %19 : vector<16x256xf32> to vector<1x16x256xf32>
    tpu.vector_store %arg7[%c0_14, %c0_15, %c0_16], %22 {strides = array<i32>} : memref<2x16x256xf32, #tpu.memory_space<vmem>>, vector<1x16x256xf32>,
    %c1 = arith.constant 1 : index
    %c0_17 = arith.constant 0 : index
    %c0_18 = arith.constant 0 : index
    %23 = vector.load %arg2[%c1, %c0_17, %c0_18] : memref<2x16x256xf32, #tpu.memory_space<vmem>>, vector<1x16x256xf32>
    %24 = vector.shape_cast %23 : vector<1x16x256xf32> to vector<16x256xf32>
    %cst_19 = arith.constant dense<0.000000e+00> : vector<32x256xf32>
    %25 = tpu.matmul %0, %24, %cst_19 {dimension_numbers = #tpu.dot_dimension_numbers<[1], [0], [0], [1], [0, 0, 1, 1], [], []>} : vector<32x16xf32>, vector<16x256xf32>, vector<32x256xf32> -> vector<32x256xf32>
    %26 = vector.broadcast %1 : vector<32x1xf32> to vector<32x256xf32>
    %27 = arith.addf %25, %26 : vector<32x256xf32>
    %cst_20 = arith.constant 5.000000e-01 : f32
    %28 = vector.broadcast %cst_20 : f32 to vector<32x256xf32>
    %29 = arith.mulf %28, %27 : vector<32x256xf32>
    %cst_21 = arith.constant 0.707106769 : f32
    %30 = vector.broadcast %cst_21 : f32 to vector<32x256xf32>
    %31 = arith.mulf %27, %30 : vector<32x256xf32>
    %32 = math.erf %31 : vector<32x256xf32>
    %cst_22 = arith.constant 1.000000e+00 : f32
    %33 = vector.broadcast %cst_22 : f32 to vector<32x256xf32>
    %34 = arith.addf %33, %32 : vector<32x256xf32>
    %35 = arith.mulf %29, %34 : vector<32x256xf32>
    %cst_23 = arith.constant dense<0.000000e+00> : vector<16x256xf32>
    %36 = tpu.matmul %2, %35, %cst_23 {dimension_numbers = #tpu.dot_dimension_numbers<[1], [0], [0], [1], [0, 0, 1, 1], [], []>} : vector<16x32xf32>, vector<32x256xf32>, vector<16x256xf32> -> vector<16x256xf32>
    %37 = vector.broadcast %3 : vector<16x1xf32> to vector<16x256xf32>
    %38 = arith.addf %36, %37 : vector<16x256xf32>
    %c1_24 = arith.constant 1 : index
    %c0_25 = arith.constant 0 : index
    %c0_26 = arith.constant 0 : index
    %39 = vector.load %arg7[%c1_24, %c0_25, %c0_26] : memref<2x16x256xf32, #tpu.memory_space<vmem>>, vector<1x16x256xf32>
    %40 = vector.shape_cast %39 : vector<1x16x256xf32> to vector<16x256xf32>
    %41 = vector.shape_cast %38 : vector<16x256xf32> to vector<1x16x256xf32>
    tpu.vector_store %arg7[%c1_24, %c0_25, %c0_26], %41 {strides = array<i32>} : memref<2x16x256xf32, #tpu.memory_space<vmem>>, vector<1x16x256xf32>,
    return
  }
  func.func @transform_0(%arg0: i32, %arg1: i32) -> (i32, i32, i32) {
    %c0_i32 = arith.constant 0 : i32
    %c0_i32_0 = arith.constant 0 : i32
    return %arg0, %c0_i32, %arg1 : i32, i32, i32
  }
  func.func @transform_1(%arg0: i32, %arg1: i32) -> (i32, i32) {
    %c0_i32 = arith.constant 0 : i32
    %c0_i32_0 = arith.constant 0 : i32
    %c0_i32_1 = arith.constant 0 : i32
    return %c0_i32, %c0_i32_0 : i32, i32
  }
  func.func @transform_2(%arg0: i32, %arg1: i32) -> (i32, i32) {
    %c0_i32 = arith.constant 0 : i32
    %c0_i32_0 = arith.constant 0 : i32
    %c0_i32_1 = arith.constant 0 : i32
    return %c0_i32, %c0_i32_0 : i32, i32
  }
  func.func @transform_3(%arg0: i32, %arg1: i32) -> (i32, i32) {
    %c0_i32 = arith.constant 0 : i32
    %c0_i32_0 = arith.constant 0 : i32
    %c0_i32_1 = arith.constant 0 : i32
    return %c0_i32, %c0_i32_0 : i32, i32
  }
  func.func @transform_4(%arg0: i32, %arg1: i32) -> (i32, i32) {
    %c0_i32 = arith.constant 0 : i32
    %c0_i32_0 = arith.constant 0 : i32
    %c0_i32_1 = arith.constant 0 : i32
    return %c0_i32, %c0_i32_0 : i32, i32
  }
  func.func @transform_5(%arg0: i32, %arg1: i32) -> (i32, i32, i32) {
    %c0_i32 = arith.constant 0 : i32
    %c0_i32_0 = arith.constant 0 : i32
    return %arg0, %c0_i32, %arg1 : i32, i32, i32
  }
}

</mosaic_0001>

<llo_original>
// kernel: tpu_custom_call.1
$region0: #{tpu_custom_call.1}
  #allocation0 [shape = 'u32[]', space=smem, size = 0x4, offset = 0x4, fixed_abs, tag = 'smem constant byte address 0x4 - core index']
  #allocation1 [shape = 'u32[144,128]{1,0:T(1,128)}', space=vmem, size = 0x12000, scoped, tag = 'internal scratch']
  %s0 = inlined_call_operand.vmem [shape: f32[2,16,256], index: 0, kind: input, shape index: {}]
  %s1 = inlined_call_operand.vmem [shape: f32[32,16], index: 1, kind: input, shape index: {}]
  %s2 = inlined_call_operand.vmem [shape: f32[32,1], index: 2, kind: input, shape index: {}]
  %s3 = inlined_call_operand.vmem [shape: f32[16,32], index: 3, kind: input, shape index: {}]
  %s4 = inlined_call_operand.vmem [shape: f32[16,1], index: 4, kind: input, shape index: {}]
  %s5 = inlined_call_operand.hbm [shape: f32[2,16,256], index: 5, kind: output, shape index: {}]
  %s6 = sld [smem:[#allocation0]]
  $region30: #{tpu_custom_call.1} parent=0
    _
  %s8 = ssub.s32 1, %s6
  %s9 = scalar_select 0, %s8, %s6
  $region1: #{tpu_custom_call.1} parent=0
    #allocation2 [shape = 'u8[32768]{0}', space=vmem, size = 0x8000, scoped, tag = 'output window, operand 0, single buffered']
    #allocation3 [shape = 's32[1]{0}', space=sflag, size = 0x4, scoped, tag = 'scoped memory for tpu_custom_call.1']
    %10 = vsyncpa [#allocation3], 0
    // Predicated region
    $region2: #{tpu_custom_call.1} parent=1 // pred_check
      _
    $region3: #{tpu_custom_call.1} parent=1 // pred_check_branch
      %12 = sbr.rel (0) target = $region5
    $region4: #{tpu_custom_call.1} parent=1 // pred_region
      _
    $region5: #{tpu_custom_call.1} parent=1 // pred_fallthru
      _
    // Predicated region
    $region6: #{tpu_custom_call.1} parent=1 // pred_check
      _
    $region7: #{tpu_custom_call.1} parent=1 // pred_check_branch
      %14 = sbr.rel (0) target = $region9
    $region8: #{tpu_custom_call.1} parent=1 // pred_region
      _
    $region9: #{tpu_custom_call.1} parent=1 // pred_fallthru
      _
    // Predicated region
    $region10: #{tpu_custom_call.1} parent=1 // pred_check
      _
    $region11: #{tpu_custom_call.1} parent=1 // pred_check_branch
      %16 = sbr.rel (0) target = $region13
    $region12: #{tpu_custom_call.1} parent=1 // pred_region
      _
    $region13: #{tpu_custom_call.1} parent=1 // pred_fallthru
      _
    // Predicated region
    $region14: #{tpu_custom_call.1} parent=1 // pred_check
      _
    $region15: #{tpu_custom_call.1} parent=1 // pred_check_branch
      %18 = sbr.rel (0) target = $region17
    $region16: #{tpu_custom_call.1} parent=1 // pred_region
      _
    $region17: #{tpu_custom_call.1} parent=1 // pred_fallthru
      _
    // Predicated region
    $region18: #{tpu_custom_call.1} parent=1 // pred_check
      _
    $region19: #{tpu_custom_call.1} parent=1 // pred_check_branch
      %20 = sbr.rel (0) target = $region21
    $region20: #{tpu_custom_call.1} parent=1 // pred_region
      _
    $region21: #{tpu_custom_call.1} parent=1 // pred_fallthru
      _
    %v21 = vld [vmem:[%s1] sm:$0xff]
    %v22 = vld [vmem:[%s1 + $0x8] sm:$0xff]
    %v23 = vld [vmem:[%s1 + $0x10] sm:$0xff]
    %v24 = vld [vmem:[%s1 + $0x18] sm:$0xff]
    %v25 = vld [vmem:[%s2] sm:$0xff]
    %v26 = vld [vmem:[%s2 + $0x8] sm:$0xff]
    %v27 = vld [vmem:[%s2 + $0x10] sm:$0xff]
    %v28 = vld [vmem:[%s2 + $0x18] sm:$0xff]
    %v29 = vld [vmem:[%s3] sm:$0xff]
    %v30 = vld [vmem:[%s3 + $0x8] sm:$0xff]
    %v31 = vld [vmem:[%s4] sm:$0xff]
    %v32 = vld [vmem:[%s4 + $0x8] sm:$0xff]
    %v33 = vld [vmem:[%s0] sm:$0xff]
    %v34 = vld [vmem:[%s0 + $0x8] sm:$0xff]
    %v35 = vld [vmem:[%s0 + $0x10] sm:$0xff]
    %v36 = vld [vmem:[%s0 + $0x18] sm:$0xff]
    %38 = vset.pattern.permute.xlu0 0
    %39 = vperm.xlu0 %38, %v25
    %v40 = vpop.permute.xlu0 %39
    %43 = vset.pattern.permute.xlu0 0
    %44 = vperm.xlu0 %43, %v26
    %v45 = vpop.permute.xlu0 %44
    %48 = vset.pattern.permute.xlu0 0
    %49 = vperm.xlu0 %48, %v27
    %v50 = vpop.permute.xlu0 %49
    %53 = vset.pattern.permute.xlu0 0
    %54 = vperm.xlu0 %53, %v28
    %v55 = vpop.permute.xlu0 %54
    %vm57 = vcmask 130048
    %v59 = vsel %vm57, %v21, 0
    %v62 = vsel %vm57, %v22, 0
    %v65 = vsel %vm57, %v23, 0
    %v68 = vsel %vm57, %v24, 0
    %70 = vmatprep.subr.mxu0 %v34
    %71 = vmatpush1.msra.mxu0 %v33
    %72 = vmatprep.subr.mxu0 %v36
    %73 = vmatpush1.msra.mxu0 %v35
    %74 = vmatprep.subr.mxu0 0.0
    %75 = vmatpush1.msra.mxu0 0.0
    %76 = vmatprep.subr.mxu0 0.0
    %77 = vmatpush1.msra.mxu0 0.0
    %78 = vmatprep.subr.mxu0 0.0
    %79 = vmatpush1.msra.mxu0 0.0
    %80 = vmatprep.subr.mxu0 0.0
    %81 = vmatpush1.msra.mxu0 0.0
    %82 = vmatprep.subr.mxu0 0.0
    %83 = vmatpush1.msra.mxu0 0.0
    %84 = vmatprep.subr.mxu0 0.0
    %85 = vmatpush1.msra.mxu0 0.0
    %86 = vmatprep.subr.mxu0 0.0
    %87 = vmatpush1.msra.mxu0 0.0
    %88 = vmatprep.subr.mxu0 0.0
    %89 = vmatpush1.msra.mxu0 0.0
    %90 = vmatprep.subr.mxu0 0.0
    %91 = vmatpush1.msra.mxu0 0.0
    %92 = vmatprep.subr.mxu0 0.0
    %93 = vmatpush1.msra.mxu0 0.0
    %94 = vmatprep.subr.mxu0 0.0
    %95 = vmatpush1.msra.mxu0 0.0
    %96 = vmatprep.subr.mxu0 0.0
    %97 = vmatpush1.msra.mxu0 0.0
    %98 = vmatprep.subr.mxu0 0.0
    %99 = vmatpush1.msra.mxu0 0.0
    %100 = vmatprep.subr.mxu0 0.0
    %101 = vmatpush1.msra.mxu0 0.0
    %102 = vmatprep.subr.mxu0 0.0
    %103 = vmatpush1.msra.mxu0 0.0
    %104 = vmatprep.subr.mxu0 0.0
    %105 = vmatpush1.msra.mxu0 0.0
    %106 = vmatprep.subr.mxu0 0.0
    %107 = vmatpush1.msra.mxu0 0.0
    %108 = vmatprep.subr.mxu0 0.0
    %109 = vmatpush1.msra.mxu0 0.0
    %110 = vmatprep.subr.mxu0 0.0
    %111 = vmatpush1.msra.mxu0 0.0
    %112 = vmatprep.subr.mxu0 0.0
    %113 = vmatpush1.msra.mxu0 0.0
    %114 = vmatprep.subr.mxu0 0.0
    %115 = vmatpush1.msra.mxu0 0.0
    %116 = vmatprep.subr.mxu0 0.0
    %117 = vmatpush1.msra.mxu0 0.0
    %118 = vmatprep.subr.mxu0 0.0
    %119 = vmatpush1.msra.mxu0 0.0
    %120 = vmatprep.subr.mxu0 0.0
    %121 = vmatpush1.msra.mxu0 0.0
    %122 = vmatprep.subr.mxu0 0.0
    %123 = vmatpush1.msra.mxu0 0.0
    %124 = vmatprep.subr.mxu0 0.0
    %125 = vmatpush1.msra.mxu0 0.0
    %126 = vmatprep.subr.mxu0 0.0
    %127 = vmatpush1.msra.mxu0 0.0
    %128 = vmatprep.subr.mxu0 0.0
    %129 = vmatpush1.msra.mxu0 0.0
    %130 = vmatprep.subr.mxu0 0.0
    %131 = vmatpush1.msra.mxu0 0.0
    %132 = vmatprep.subr.mxu0 0.0
    %133 = vmatpush1.msra.mxu0 0.0
    %134 = vmatprep.mubr.f32.mxu0 0.0
    %135 = vmatmul.mubr.f32.gmra.mrb[0].mxu0 %v59
    %v136 = vpop.f32.mrb[0].mxu0
    %v137 = vadd.f32 %v40, %v136
    %v138 = vpop.f32.mrb[0].mxu0
    %v139 = vadd.f32 %v40, %v138
    %140 = vmatprep.mubr.f32.mxu0 0.0
    %141 = vmatmul.mubr.f32.gmra.mrb[0].mxu0 %v62
    %v142 = vpop.f32.mrb[0].mxu0
    %v143 = vadd.f32 %v45, %v142
    %v144 = vpop.f32.mrb[0].mxu0
    %v145 = vadd.f32 %v45, %v144
    %146 = vmatprep.mubr.f32.mxu0 0.0
    %147 = vmatmul.mubr.f32.gmra.mrb[0].mxu0 %v65
    %v148 = vpop.f32.mrb[0].mxu0
    %v149 = vadd.f32 %v50, %v148
    %v150 = vpop.f32.mrb[0].mxu0
    %v151 = vadd.f32 %v50, %v150
    %152 = vmatprep.mubr.f32.mxu0 0.0
    %153 = vmatmul.mubr.f32.gmra.mrb[0].mxu0 %v68
    %v154 = vpop.f32.mrb[0].mxu0
    %v155 = vadd.f32 %v55, %v154
    %v156 = vpop.f32.mrb[0].mxu0
    %v157 = vadd.f32 %v55, %v156
    %158 = vdwg.mxu0
    %v159 = vmul.f32 %v137, 0.5
    %v160 = vmul.f32 %v139, 0.5
    %v161 = vmul.f32 %v143, 0.5
    %v162 = vmul.f32 %v145, 0.5
    %v163 = vmul.f32 %v149, 0.5
    %v164 = vmul.f32 %v151, 0.5
    %v165 = vmul.f32 %v155, 0.5
    %v166 = vmul.f32 %v157, 0.5
    %v167 = vmul.f32 %v137, 0.70710677
    %v168 = vmul.f32 %v139, 0.70710677
    %v169 = vmul.f32 %v143, 0.70710677
    %v170 = vmul.f32 %v145, 0.70710677
    %v171 = vmul.f32 %v149, 0.70710677
    %v172 = vmul.f32 %v151, 0.70710677
    %v173 = vmul.f32 %v155, 0.70710677
    %v174 = vmul.f32 %v157, 0.70710677
    %v175 = verf.f32.pop %v167
    %v176 = verf.f32.pop %v168
    %v177 = verf.f32.pop %v169
    %v178 = verf.f32.pop %v170
    %v179 = verf.f32.pop %v171
    %v180 = verf.f32.pop %v172
    %v181 = verf.f32.pop %v173
    %v182 = verf.f32.pop %v174
    %v183 = vadd.f32 %v175, 1.0
    %v184 = vadd.f32 %v176, 1.0
    %v185 = vadd.f32 %v177, 1.0
    %v186 = vadd.f32 %v178, 1.0
    %v187 = vadd.f32 %v179, 1.0
    %v188 = vadd.f32 %v180, 1.0
    %v189 = vadd.f32 %v181, 1.0
    %v190 = vadd.f32 %v182, 1.0
    %v191 = vmul.f32 %v159, %v183
    %v192 = vmul.f32 %v160, %v184
    %v193 = vmul.f32 %v161, %v185
    %v194 = vmul.f32 %v162, %v186
    %v195 = vmul.f32 %v163, %v187
    %v196 = vmul.f32 %v164, %v188
    %v197 = vmul.f32 %v165, %v189
    %v198 = vmul.f32 %v166, %v190
    %200 = vset.pattern.permute.xlu0 0
    %201 = vperm.xlu0 %200, %v31
    %v202 = vpop.permute.xlu0 %201
    %205 = vset.pattern.permute.xlu0 0
    %206 = vperm.xlu0 %205, %v32
    %v207 = vpop.permute.xlu0 %206
    %vm209 = vcmask 261120
    %v211 = vsel %vm209, %v29, 0
    %v214 = vsel %vm209, %v30, 0
    %216 = vmatprep.subr.mxu0 %v192
    %217 = vmatpush1.msra.mxu0 %v191
    %218 = vmatprep.subr.mxu0 %v194
    %219 = vmatpush1.msra.mxu0 %v193
    %220 = vmatprep.subr.mxu0 %v196
    %221 = vmatpush1.msra.mxu0 %v195
    %222 = vmatprep.subr.mxu0 %v198
    %223 = vmatpush1.msra.mxu0 %v197
    %224 = vmatprep.subr.mxu0 0.0
    %225 = vmatpush1.msra.mxu0 0.0
    %226 = vmatprep.subr.mxu0 0.0
    %227 = vmatpush1.msra.mxu0 0.0
    %228 = vmatprep.subr.mxu0 0.0
    %229 = vmatpush1.msra.mxu0 0.0
    %230 = vmatprep.subr.mxu0 0.0
    %231 = vmatpush1.msra.mxu0 0.0
    %232 = vmatprep.subr.mxu0 0.0
    %233 = vmatpush1.msra.mxu0 0.0
    %234 = vmatprep.subr.mxu0 0.0
    %235 = vmatpush1.msra.mxu0 0.0
    %236 = vmatprep.subr.mxu0 0.0
    %237 = vmatpush1.msra.mxu0 0.0
    %238 = vmatprep.subr.mxu0 0.0
    %239 = vmatpush1.msra.mxu0 0.0
    %240 = vmatprep.subr.mxu0 0.0
    %241 = vmatpush1.msra.mxu0 0.0
    %242 = vmatprep.subr.mxu0 0.0
    %243 = vmatpush1.msra.mxu0 0.0
    %244 = vmatprep.subr.mxu0 0.0
    %245 = vmatpush1.msra.mxu0 0.0
    %246 = vmatprep.subr.mxu0 0.0
    %247 = vmatpush1.msra.mxu0 0.0
    %248 = vmatprep.subr.mxu0 0.0
    %249 = vmatpush1.msra.mxu0 0.0
    %250 = vmatprep.subr.mxu0 0.0
    %251 = vmatpush1.msra.mxu0 0.0
    %252 = vmatprep.subr.mxu0 0.0
    %253 = vmatpush1.msra.mxu0 0.0
    %254 = vmatprep.subr.mxu0 0.0
    %255 = vmatpush1.msra.mxu0 0.0
    %256 = vmatprep.subr.mxu0 0.0
    %257 = vmatpush1.msra.mxu0 0.0
    %258 = vmatprep.subr.mxu0 0.0
    %259 = vmatpush1.msra.mxu0 0.0
    %260 = vmatprep.subr.mxu0 0.0
    %261 = vmatpush1.msra.mxu0 0.0
    %262 = vmatprep.subr.mxu0 0.0
    %263 = vmatpush1.msra.mxu0 0.0
    %264 = vmatprep.subr.mxu0 0.0
    %265 = vmatpush1.msra.mxu0 0.0
    %266 = vmatprep.subr.mxu0 0.0
    %267 = vmatpush1.msra.mxu0 0.0
    %268 = vmatprep.subr.mxu0 0.0
    %269 = vmatpush1.msra.mxu0 0.0
    %270 = vmatprep.subr.mxu0 0.0
    %271 = vmatpush1.msra.mxu0 0.0
    %272 = vmatprep.subr.mxu0 0.0
    %273 = vmatpush1.msra.mxu0 0.0
    %274 = vmatprep.subr.mxu0 0.0
    %275 = vmatpush1.msra.mxu0 0.0
    %276 = vmatprep.subr.mxu0 0.0
    %277 = vmatpush1.msra.mxu0 0.0
    %278 = vmatprep.subr.mxu0 0.0
    %279 = vmatpush1.msra.mxu0 0.0
    %280 = vmatprep.mubr.f32.mxu0 0.0
    %281 = vmatmul.mubr.f32.gmra.mrb[0].mxu0 %v211
    %v282 = vpop.f32.mrb[0].mxu0
    %v283 = vadd.f32 %v202, %v282
    %v284 = vpop.f32.mrb[0].mxu0
    %v285 = vadd.f32 %v202, %v284
    %286 = vmatprep.mubr.f32.mxu0 0.0
    %287 = vmatmul.mubr.f32.gmra.mrb[0].mxu0 %v214
    %v288 = vpop.f32.mrb[0].mxu0
    %v289 = vadd.f32 %v207, %v288
    %v290 = vpop.f32.mrb[0].mxu0
    %v291 = vadd.f32 %v207, %v290
    %292 = vdwg.mxu0
    %293 = vst [vmem:[#allocation2] sm:$0xff] %v283
    %294 = vst [vmem:[#allocation2 + $0x8] sm:$0xff] %v285
    %295 = vst [vmem:[#allocation2 + $0x10] sm:$0xff] %v289
    %296 = vst [vmem:[#allocation2 + $0x18] sm:$0xff] %v291
    %s297 = scalar_lea.vmem %s0, 32
    %v298 = vld [vmem:[%s297] sm:$0xff]
    %v299 = vld [vmem:[%s297 + $0x8] sm:$0xff]
    %v300 = vld [vmem:[%s297 + $0x10] sm:$0xff]
    %v301 = vld [vmem:[%s297 + $0x18] sm:$0xff]
    %302 = vmatprep.subr.mxu0 %v299
    %303 = vmatpush1.msra.mxu0 %v298
    %304 = vmatprep.subr.mxu0 %v301
    %305 = vmatpush1.msra.mxu0 %v300
    %306 = vmatprep.subr.mxu0 0.0
    %307 = vmatpush1.msra.mxu0 0.0
    %308 = vmatprep.subr.mxu0 0.0
    %309 = vmatpush1.msra.mxu0 0.0
    %310 = vmatprep.subr.mxu0 0.0
    %311 = vmatpush1.msra.mxu0 0.0
    %312 = vmatprep.subr.mxu0 0.0
    %313 = vmatpush1.msra.mxu0 0.0
    %314 = vmatprep.subr.mxu0 0.0
    %315 = vmatpush1.msra.mxu0 0.0
    %316 = vmatprep.subr.mxu0 0.0
    %317 = vmatpush1.msra.mxu0 0.0
    %318 = vmatprep.subr.mxu0 0.0
    %319 = vmatpush1.msra.mxu0 0.0
    %320 = vmatprep.subr.mxu0 0.0
    %321 = vmatpush1.msra.mxu0 0.0
    %322 = vmatprep.subr.mxu0 0.0
    %323 = vmatpush1.msra.mxu0 0.0
    %324 = vmatprep.subr.mxu0 0.0
    %325 = vmatpush1.msra.mxu0 0.0
    %326 = vmatprep.subr.mxu0 0.0
    %327 = vmatpush1.msra.mxu0 0.0
    %328 = vmatprep.subr.mxu0 0.0
    %329 = vmatpush1.msra.mxu0 0.0
    %330 = vmatprep.subr.mxu0 0.0
    %331 = vmatpush1.msra.mxu0 0.0
    %332 = vmatprep.subr.mxu0 0.0
    %333 = vmatpush1.msra.mxu0 0.0
    %334 = vmatprep.subr.mxu0 0.0
    %335 = vmatpush1.msra.mxu0 0.0
    %336 = vmatprep.subr.mxu0 0.0
    %337 = vmatpush1.msra.mxu0 0.0
    %338 = vmatprep.subr.mxu0 0.0
    %339 = vmatpush1.msra.mxu0 0.0
    %340 = vmatprep.subr.mxu0 0.0
    %341 = vmatpush1.msra.mxu0 0.0
    %342 = vmatprep.subr.mxu0 0.0
    %343 = vmatpush1.msra.mxu0 0.0
    %344 = vmatprep.subr.mxu0 0.0
    %345 = vmatpush1.msra.mxu0 0.0
    %346 = vmatprep.subr.mxu0 0.0
    %347 = vmatpush1.msra.mxu0 0.0
    %348 = vmatprep.subr.mxu0 0.0
    %349 = vmatpush1.msra.mxu0 0.0
    %350 = vmatprep.subr.mxu0 0.0
    %351 = vmatpush1.msra.mxu0 0.0
    %352 = vmatprep.subr.mxu0 0.0
    %353 = vmatpush1.msra.mxu0 0.0
    %354 = vmatprep.subr.mxu0 0.0
    %355 = vmatpush1.msra.mxu0 0.0
    %356 = vmatprep.subr.mxu0 0.0
    %357 = vmatpush1.msra.mxu0 0.0
    %358 = vmatprep.subr.mxu0 0.0
    %359 = vmatpush1.msra.mxu0 0.0
    %360 = vmatprep.subr.mxu0 0.0
    %361 = vmatpush1.msra.mxu0 0.0
    %362 = vmatprep.subr.mxu0 0.0
    %363 = vmatpush1.msra.mxu0 0.0
    %364 = vmatprep.subr.mxu0 0.0
    %365 = vmatpush1.msra.mxu0 0.0
    %366 = vmatprep.mubr.f32.mxu0 0.0
    %367 = vmatmul.mubr.f32.gmra.mrb[0].mxu0 %v59
    %v368 = vpop.f32.mrb[0].mxu0
    %v369 = vadd.f32 %v40, %v368
    %v370 = vpop.f32.mrb[0].mxu0
    %v371 = vadd.f32 %v40, %v370
    %372 = vmatprep.mubr.f32.mxu0 0.0
    %373 = vmatmul.mubr.f32.gmra.mrb[0].mxu0 %v62
    %v374 = vpop.f32.mrb[0].mxu0
    %v375 = vadd.f32 %v45, %v374
    %v376 = vpop.f32.mrb[0].mxu0
    %v377 = vadd.f32 %v45, %v376
    %378 = vmatprep.mubr.f32.mxu0 0.0
    %379 = vmatmul.mubr.f32.gmra.mrb[0].mxu0 %v65
    %v380 = vpop.f32.mrb[0].mxu0
    %v381 = vadd.f32 %v50, %v380
    %v382 = vpop.f32.mrb[0].mxu0
    %v383 = vadd.f32 %v50, %v382
    %384 = vmatprep.mubr.f32.mxu0 0.0
    %385 = vmatmul.mubr.f32.gmra.mrb[0].mxu0 %v68
    %v386 = vpop.f32.mrb[0].mxu0
    %v387 = vadd.f32 %v55, %v386
    %v388 = vpop.f32.mrb[0].mxu0
    %v389 = vadd.f32 %v55, %v388
    %390 = vdwg.mxu0
    %v391 = vmul.f32 %v369, 0.5
    %v392 = vmul.f32 %v371, 0.5
    %v393 = vmul.f32 %v375, 0.5
    %v394 = vmul.f32 %v377, 0.5
    %v395 = vmul.f32 %v381, 0.5
    %v396 = vmul.f32 %v383, 0.5
    %v397 = vmul.f32 %v387, 0.5
    %v398 = vmul.f32 %v389, 0.5
    %v399 = vmul.f32 %v369, 0.70710677
    %v400 = vmul.f32 %v371, 0.70710677
    %v401 = vmul.f32 %v375, 0.70710677
    %v402 = vmul.f32 %v377, 0.70710677
    %v403 = vmul.f32 %v381, 0.70710677
    %v404 = vmul.f32 %v383, 0.70710677
    %v405 = vmul.f32 %v387, 0.70710677
    %v406 = vmul.f32 %v389, 0.70710677
    %v407 = verf.f32.pop %v399
    %v408 = verf.f32.pop %v400
    %v409 = verf.f32.pop %v401
    %v410 = verf.f32.pop %v402
    %v411 = verf.f32.pop %v403
    %v412 = verf.f32.pop %v404
    %v413 = verf.f32.pop %v405
    %v414 = verf.f32.pop %v406
    %v415 = vadd.f32 %v407, 1.0
    %v416 = vadd.f32 %v408, 1.0
    %v417 = vadd.f32 %v409, 1.0
    %v418 = vadd.f32 %v410, 1.0
    %v419 = vadd.f32 %v411, 1.0
    %v420 = vadd.f32 %v412, 1.0
    %v421 = vadd.f32 %v413, 1.0
    %v422 = vadd.f32 %v414, 1.0
    %v423 = vmul.f32 %v391, %v415
    %v424 = vmul.f32 %v392, %v416
    %v425 = vmul.f32 %v393, %v417
    %v426 = vmul.f32 %v394, %v418
    %v427 = vmul.f32 %v395, %v419
    %v428 = vmul.f32 %v396, %v420
    %v429 = vmul.f32 %v397, %v421
    %v430 = vmul.f32 %v398, %v422
    %431 = vmatprep.subr.mxu0 %v424
    %432 = vmatpush1.msra.mxu0 %v423
    %433 = vmatprep.subr.mxu0 %v426
    %434 = vmatpush1.msra.mxu0 %v425
    %435 = vmatprep.subr.mxu0 %v428
    %436 = vmatpush1.msra.mxu0 %v427
    %437 = vmatprep.subr.mxu0 %v430
    %438 = vmatpush1.msra.mxu0 %v429
    %439 = vmatprep.subr.mxu0 0.0
    %440 = vmatpush1.msra.mxu0 0.0
    %441 = vmatprep.subr.mxu0 0.0
    %442 = vmatpush1.msra.mxu0 0.0
    %443 = vmatprep.subr.mxu0 0.0
    %444 = vmatpush1.msra.mxu0 0.0
    %445 = vmatprep.subr.mxu0 0.0
    %446 = vmatpush1.msra.mxu0 0.0
    %447 = vmatprep.subr.mxu0 0.0
    %448 = vmatpush1.msra.mxu0 0.0
    %449 = vmatprep.subr.mxu0 0.0
    %450 = vmatpush1.msra.mxu0 0.0
    %451 = vmatprep.subr.mxu0 0.0
    %452 = vmatpush1.msra.mxu0 0.0
    %453 = vmatprep.subr.mxu0 0.0
    %454 = vmatpush1.msra.mxu0 0.0
    %455 = vmatprep.subr.mxu0 0.0
    %456 = vmatpush1.msra.mxu0 0.0
    %457 = vmatprep.subr.mxu0 0.0
    %458 = vmatpush1.msra.mxu0 0.0
    %459 = vmatprep.subr.mxu0 0.0
    %460 = vmatpush1.msra.mxu0 0.0
    %461 = vmatprep.subr.mxu0 0.0
    %462 = vmatpush1.msra.mxu0 0.0
    %463 = vmatprep.subr.mxu0 0.0
    %464 = vmatpush1.msra.mxu0 0.0
    %465 = vmatprep.subr.mxu0 0.0
    %466 = vmatpush1.msra.mxu0 0.0
    %467 = vmatprep.subr.mxu0 0.0
    %468 = vmatpush1.msra.mxu0 0.0
    %469 = vmatprep.subr.mxu0 0.0
    %470 = vmatpush1.msra.mxu0 0.0
    %471 = vmatprep.subr.mxu0 0.0
    %472 = vmatpush1.msra.mxu0 0.0
    %473 = vmatprep.subr.mxu0 0.0
    %474 = vmatpush1.msra.mxu0 0.0
    %475 = vmatprep.subr.mxu0 0.0
    %476 = vmatpush1.msra.mxu0 0.0
    %477 = vmatprep.subr.mxu0 0.0
    %478 = vmatpush1.msra.mxu0 0.0
    %479 = vmatprep.subr.mxu0 0.0
    %480 = vmatpush1.msra.mxu0 0.0
    %481 = vmatprep.subr.mxu0 0.0
    %482 = vmatpush1.msra.mxu0 0.0
    %483 = vmatprep.subr.mxu0 0.0
    %484 = vmatpush1.msra.mxu0 0.0
    %485 = vmatprep.subr.mxu0 0.0
    %486 = vmatpush1.msra.mxu0 0.0
    %487 = vmatprep.subr.mxu0 0.0
    %488 = vmatpush1.msra.mxu0 0.0
    %489 = vmatprep.subr.mxu0 0.0
    %490 = vmatpush1.msra.mxu0 0.0
    %491 = vmatprep.subr.mxu0 0.0
    %492 = vmatpush1.msra.mxu0 0.0
    %493 = vmatprep.subr.mxu0 0.0
    %494 = vmatpush1.msra.mxu0 0.0
    %495 = vmatprep.mubr.f32.mxu0 0.0
    %496 = vmatmul.mubr.f32.gmra.mrb[0].mxu0 %v211
    %v497 = vpop.f32.mrb[0].mxu0
    %v498 = vadd.f32 %v202, %v497
    %v499 = vpop.f32.mrb[0].mxu0
    %v500 = vadd.f32 %v202, %v499
    %501 = vmatprep.mubr.f32.mxu0 0.0
    %502 = vmatmul.mubr.f32.gmra.mrb[0].mxu0 %v214
    %v503 = vpop.f32.mrb[0].mxu0
    %v504 = vadd.f32 %v207, %v503
    %v505 = vpop.f32.mrb[0].mxu0
    %v506 = vadd.f32 %v207, %v505
    %507 = vdwg.mxu0
    %s508 = scalar_lea.vmem [#allocation2], 32
    %509 = vst [vmem:[%s508] sm:$0xff] %v498
    %510 = vst [vmem:[%s508 + $0x8] sm:$0xff] %v500
    %511 = vst [vmem:[%s508 + $0x10] sm:$0xff] %v504
    %512 = vst [vmem:[%s508 + $0x18] sm:$0xff] %v506
    // Predicated region
    $region22: #{tpu_custom_call.1} parent=1 // pred_check
      _
    $region23: #{tpu_custom_call.1} parent=1 // pred_check_branch
      %514 = sbr.rel (0) target = $region25
    $region24: #{tpu_custom_call.1} parent=1 // pred_region
      %s516 = ssub.s32 1024, 1024
      %517 = vsyncadd [#allocation3], %s516
      %s518 = sshll.u32 [#allocation2], 4
      %s519 = int_to_ptr.vmem [resolvable:$true] %s518
      %524 = dma.vmem_to_hbm [thread:$0]  %s519, 1024, %s5, [#allocation3], 256, 256, 16
    $region25: #{tpu_custom_call.1} parent=1 // pred_fallthru
      _
    // Predicated region
    $region26: #{tpu_custom_call.1} parent=1 // pred_check
      _
    $region27: #{tpu_custom_call.1} parent=1 // pred_check_branch
      %526 = sbr.rel (0) target = $region29
    $region28: #{tpu_custom_call.1} parent=1 // pred_region
      %527 = dma.done [#allocation3], 1024
    $region29: #{tpu_custom_call.1} parent=1 // pred_fallthru
      _
    %528 = vsyncpa [#allocation3], 1

</llo_original>
